<compile_context>
chip_gen: v7x
topology: tpu7x:2x2x1
jax: 0.10.0
libtpu: 0.0.40
codegen_flags: <defaults>
</compile_context>

<pallas_src>
import functools

import jax
import jax.numpy as jnp
from jax import lax
from jax.experimental import pallas as pl
from jax.experimental.pallas import tpu as pltpu


def _vmem_spec():
    # Whole-array, VMEM-resident, no pipelining (shapes are tiny, grid=()).
    return pl.BlockSpec(memory_space=pltpu.MemorySpace.VMEM)


def _critic_kernel(omega_ref, w_ref, qrs_ref, w_out_ref, wdot_ref, *,
                   alpha, dt, num_steps):
    omega = omega_ref[...]                                        # (M, N)

    # ---- W-independent constants, hoisted out of the step loop ----
    nrm = jnp.sum(omega * omega, axis=1, keepdims=True) + 1.0     # (M, 1)
    # exact reciprocal: hoisted, so it is off the per-step dependency chain
    c_col = (-alpha) / (nrm * nrm)                                # (M, 1)
    omega_c = c_col * omega                                       # (M, N)
    v_row = jnp.sum((c_col * qrs_ref[...]) * omega,
                    axis=0, keepdims=True)                        # (1, N)

    def wdot(w_row):
        # s_i = omega_i . W      : broadcast over sublanes + lane reduce
        s_col = jnp.sum(omega * w_row, axis=1, keepdims=True)     # (M, 1)
        # W_dot = sum_i s_i * c_i * omega_i + v : sublane reduce
        return jnp.sum(s_col * omega_c, axis=0, keepdims=True) + v_row  # (1,N)

    w_row = w_ref[...]                                            # (1, N)
    wdot0 = wdot(w_row)
    wdot_ref[...] = wdot0          # == RHS.forward(t, W) at the *initial* W
    w_row = w_row + dt * wdot0     # first Euler step

    def step(_, w):
        return w + dt * wdot(w)

    # Remaining num_steps-1 substeps, fully unrolled (static trip count,
    # loop state is a single vreg -> no register-pressure concern).
    w_row = lax.fori_loop(1, num_steps, step, w_row, unroll=True)
    w_out_ref[...] = w_row                                        # (1, N)


@functools.partial(jax.jit, static_argnames=("alpha", "h", "num_steps"))
def critic_step(omega_all, w, q_all, rs_all, *, alpha, h, num_steps=1):
    """One fused launch: returns (W_next, W_dot_at_initial_W), both (N, 1).

    W_next mirrors Critic.update's odeint(..., method='euler')[-1] over [0, h]
    with `num_steps` equal substeps (num_steps=1 == the module's single step);
    W_dot is RHS.forward(t, W) evaluated at the input W.
    """
    omega = jnp.asarray(omega_all, jnp.float32)
    m, n = omega.shape
    w_row = jnp.asarray(w, jnp.float32).reshape(1, n)
    # The kernel only ever needs q_i + r_s_i: pre-sum to drop one operand/DMA.
    # Under jit this add fuses with the input converts (no extra dispatch).
    qrs_col = (jnp.asarray(q_all, jnp.float32)
               + jnp.asarray(rs_all, jnp.float32)).reshape(m, 1)

    num_steps = int(num_steps)
    kernel = functools.partial(_critic_kernel, alpha=float(alpha),
                               dt=float(h) / num_steps, num_steps=num_steps)
    w_next_row, wdot_row = pl.pallas_call(
        kernel,
        out_shape=(jax.ShapeDtypeStruct((1, n), jnp.float32),   # W_next
                   jax.ShapeDtypeStruct((1, n), jnp.float32)),  # W_dot
        in_specs=[_vmem_spec(), _vmem_spec(), _vmem_spec()],
        out_specs=(_vmem_spec(), _vmem_spec()),
        # Reuse the W operand's buffer for W_next.  Safe under jit: the operand
        # is an intermediate; XLA inserts a copy if the caller's buffer would
        # otherwise be clobbered.
        input_output_aliases={1: 0},
    )(omega, w_row, qrs_col)
    # restore the module's (N, 1) column convention outside the kernel
    return w_next_row.reshape(n, 1), wdot_row.reshape(n, 1)


def critic_rhs_wdot(omega_all, w, q_all, rs_all, alpha):
    """W_dot = RHS.forward(t, W) for the stacked system. Returns (N, 1)."""
    _, wdot = critic_step(omega_all, w, q_all, rs_all,
                          alpha=float(alpha), h=0.0, num_steps=1)
    return wdot


def critic_update_euler(omega_all, w, q_all, rs_all, alpha, h, num_steps=1):
    """Mirrors Critic.update's odeint(...)[-1] with explicit Euler over [0, h]."""
    # TODO(synk): adaptive odeint methods (e.g. dopri5) are solver control
    # flow, not a kernel hot path; only fixed-step explicit Euler is fused.
    w_next, _ = critic_step(omega_all, w, q_all, rs_all,
                            alpha=float(alpha), h=float(h),
                            num_steps=int(num_steps))
    return w_next


# ----------------------------- references -----------------------------------

def _reference_rhs(omega_all, w, q_all, rs_all, alpha):
    """Pure-JAX transcription of the torch loop in RHS.forward."""
    omega_t = omega_all[0:1].T          # (N, 1)
    q_t = q_all[0, 0]
    rs_t = rs_all[0, 0]
    w_dot = -alpha * (omega_t @ (omega_t.T @ w + rs_t + q_t)) / (
        omega_t.T @ omega_t + 1.0
    ) ** 2
    for i in range(1, omega_all.shape[0]):
        omega_i = omega_all[i:i + 1].T
        q_i = q_all[i, 0]
        rs_i = rs_all[i, 0]
        w_dot = w_dot - alpha * (omega_i @ (omega_i.T @ w + q_i + rs_i)) / (
            omega_i.T @ omega_i + 1.0
        ) ** 2
    return w_dot


def _reference_update(omega_all, w, q_all, rs_all, alpha, h, num_steps):
    dt = h / num_steps
    for _ in range(num_steps):
        w = w + dt * _reference_rhs(omega_all, w, q_all, rs_all, alpha)
    return w


if __name__ == "__main__":
    # Small, deterministic problem: N basis functions, a stack of M_STACK
    # stored samples plus the current sample (row 0).
    N = 16           # Critic(N=16, ...)
    M_STACK = 7      # len(self.omega) after 7 calls to update_stack
    M_TOTAL = M_STACK + 1
    ALPHA = 0.5
    H = 0.01
    NUM_STEPS = 8    # in-kernel integration substeps for the fused update

    key = jax.random.PRNGKey(0)
    k_w, k_om, k_q, k_rs = jax.random.split(key, 4)

    W = jax.random.uniform(k_w, (N, 1), dtype=jnp.float32)       # torch.rand((N,1))
    Omega = jax.random.normal(k_om, (M_TOTAL, N), dtype=jnp.float32)
    Q = jax.random.uniform(k_q, (M_TOTAL, 1), dtype=jnp.float32)
    RS = jax.random.uniform(k_rs, (M_TOTAL, 1), dtype=jnp.float32)

    # Fused launch: W_dot at the initial W + one Euler step of size H.
    w1, wdot = jax.block_until_ready(
        critic_step(Omega, W, Q, RS, alpha=ALPHA, h=H, num_steps=1))
    wdot_ref = _reference_rhs(Omega, W, Q, RS, ALPHA)
    assert wdot.shape == (N, 1) and w1.shape == (N, 1)
    assert jnp.allclose(wdot, wdot_ref, rtol=1e-5, atol=1e-5), "W_dot mismatch"
    assert jnp.allclose(w1, W + H * wdot_ref, rtol=1e-5, atol=1e-5), \
        "euler(1) mismatch"

    # Compatibility wrappers (same fused kernel underneath).
    wdot2 = jax.block_until_ready(critic_rhs_wdot(Omega, W, Q, RS, ALPHA))
    assert jnp.allclose(wdot2, wdot_ref, rtol=1e-5, atol=1e-5), \
        "rhs wrapper mismatch"

    # Multi-substep integration, loop fully unrolled inside the single launch.
    wk = jax.block_until_ready(
        critic_update_euler(Omega, W, Q, RS, ALPHA, H, num_steps=NUM_STEPS))
    wk_ref = _reference_update(Omega, W, Q, RS, ALPHA, H, NUM_STEPS)
    assert wk.shape == (N, 1)
    assert jnp.allclose(wk, wk_ref, rtol=1e-5, atol=1e-5), "euler(k) mismatch"

    print("KERNEL_OK")
</pallas_src>

<mosaic_0001>
module attributes {stable_mosaic.version = 11 : i64} {
  func.func @_critic_kernel(%arg0: memref<8x16xf32, #tpu.memory_space<vmem>>, %arg1: memref<1x16xf32, #tpu.memory_space<vmem>>, %arg2: memref<8x1xf32, #tpu.memory_space<vmem>>, %arg3: memref<1x16xf32, #tpu.memory_space<vmem>>, %arg4: memref<1x16xf32, #tpu.memory_space<vmem>>) attributes {dimension_semantics = [], scalar_prefetch = 0 : i64, scratch_operands = 0 : i64, tpu.core_type = #tpu.core_type<tc>} {
    %c0 = arith.constant 0 : index
    %c0_0 = arith.constant 0 : index
    %0 = vector.load %arg0[%c0, %c0_0] : memref<8x16xf32, #tpu.memory_space<vmem>>, vector<8x16xf32>
    %1 = arith.mulf %0, %0 : vector<8x16xf32>
    %cst = arith.constant dense<0.000000e+00> : vector<8xf32>
    %2 = vector.multi_reduction <add>, %1, %cst [1] : vector<8x16xf32> to vector<8xf32>
    %3 = vector.shape_cast %2 : vector<8xf32> to vector<8x1xf32>
    %cst_1 = arith.constant 1.000000e+00 : f32
    %4 = vector.broadcast %cst_1 : f32 to vector<8x1xf32>
    %5 = arith.addf %3, %4 : vector<8x1xf32>
    %6 = arith.mulf %5, %5 : vector<8x1xf32>
    %cst_2 = arith.constant -5.000000e-01 : f32
    %7 = vector.broadcast %cst_2 : f32 to vector<8x1xf32>
    %8 = arith.divf %7, %6 : vector<8x1xf32>
    %9 = vector.broadcast %8 : vector<8x1xf32> to vector<8x16xf32>
    %10 = arith.mulf %9, %0 : vector<8x16xf32>
    %c0_3 = arith.constant 0 : index
    %c0_4 = arith.constant 0 : index
    %11 = vector.load %arg2[%c0_3, %c0_4] : memref<8x1xf32, #tpu.memory_space<vmem>>, vector<8x1xf32>
    %12 = arith.mulf %8, %11 : vector<8x1xf32>
    %13 = vector.broadcast %12 : vector<8x1xf32> to vector<8x16xf32>
    %14 = arith.mulf %13, %0 : vector<8x16xf32>
    %cst_5 = arith.constant dense<0.000000e+00> : vector<16xf32>
    %15 = vector.multi_reduction <add>, %14, %cst_5 [0] : vector<8x16xf32> to vector<16xf32>
    %16 = vector.shape_cast %15 : vector<16xf32> to vector<1x16xf32>
    %c0_6 = arith.constant 0 : index
    %c0_7 = arith.constant 0 : index
    %17 = vector.load %arg1[%c0_6, %c0_7] : memref<1x16xf32, #tpu.memory_space<vmem>>, vector<1x16xf32>
    %18 = vector.broadcast %17 : vector<1x16xf32> to vector<8x16xf32>
    %19 = arith.mulf %0, %18 : vector<8x16xf32>
    %cst_8 = arith.constant dense<0.000000e+00> : vector<8xf32>
    %20 = vector.multi_reduction <add>, %19, %cst_8 [1] : vector<8x16xf32> to vector<8xf32>
    %21 = vector.shape_cast %20 : vector<8xf32> to vector<8x1xf32>
    %22 = vector.broadcast %21 : vector<8x1xf32> to vector<8x16xf32>
    %23 = arith.mulf %22, %10 : vector<8x16xf32>
    %cst_9 = arith.constant dense<0.000000e+00> : vector<16xf32>
    %24 = vector.multi_reduction <add>, %23, %cst_9 [0] : vector<8x16xf32> to vector<16xf32>
    %25 = vector.shape_cast %24 : vector<16xf32> to vector<1x16xf32>
    %26 = arith.addf %25, %16 : vector<1x16xf32>
    %c0_10 = arith.constant 0 : index
    %c0_11 = arith.constant 0 : index
    %27 = vector.load %arg4[%c0_10, %c0_11] : memref<1x16xf32, #tpu.memory_space<vmem>>, vector<1x16xf32>
    tpu.vector_store %arg4[%c0_10, %c0_11], %26 {strides = array<i32>} : memref<1x16xf32, #tpu.memory_space<vmem>>, vector<1x16xf32>,
    %cst_12 = arith.constant 0.00999999977 : f32
    %28 = vector.broadcast %cst_12 : f32 to vector<1x16xf32>
    %29 = arith.mulf %28, %26 : vector<1x16xf32>
    %30 = arith.addf %17, %29 : vector<1x16xf32>
    %c0_i32 = arith.constant 0 : i32
    %c0_i32_13 = arith.constant 0 : i32
    %31 = arith.addi %c0_i32, %c0_i32_13 : i32
    %c1_i32 = arith.constant 1 : i32
    %32 = scf.for %arg5 = %c0_i32 to %31 step %c1_i32 iter_args(%arg6 = %30) -> (vector<1x16xf32>)  : i32 {
      %34 = vector.broadcast %arg6 : vector<1x16xf32> to vector<8x16xf32>
      %35 = arith.mulf %0, %34 : vector<8x16xf32>
      %cst_16 = arith.constant dense<0.000000e+00> : vector<8xf32>
      %36 = vector.multi_reduction <add>, %35, %cst_16 [1] : vector<8x16xf32> to vector<8xf32>
      %37 = vector.shape_cast %36 : vector<8xf32> to vector<8x1xf32>
      %38 = vector.broadcast %37 : vector<8x1xf32> to vector<8x16xf32>
      %39 = arith.mulf %38, %10 : vector<8x16xf32>
      %cst_17 = arith.constant dense<0.000000e+00> : vector<16xf32>
      %40 = vector.multi_reduction <add>, %39, %cst_17 [0] : vector<8x16xf32> to vector<16xf32>
      %41 = vector.shape_cast %40 : vector<16xf32> to vector<1x16xf32>
      %42 = arith.addf %41, %16 : vector<1x16xf32>
      %cst_18 = arith.constant 0.00999999977 : f32
      %43 = vector.broadcast %cst_18 : f32 to vector<1x16xf32>
      %44 = arith.mulf %43, %42 : vector<1x16xf32>
      %45 = arith.addf %arg6, %44 : vector<1x16xf32>
      scf.yield %45 : vector<1x16xf32>
    }
    %c0_14 = arith.constant 0 : index
    %c0_15 = arith.constant 0 : index
    %33 = vector.load %arg3[%c0_14, %c0_15] : memref<1x16xf32, #tpu.memory_space<vmem>>, vector<1x16xf32>
    tpu.vector_store %arg3[%c0_14, %c0_15], %32 {strides = array<i32>} : memref<1x16xf32, #tpu.memory_space<vmem>>, vector<1x16xf32>,
    return
  }
}

</mosaic_0001>

<llo_original>
// kernel: critic_step.1
$region0: #{critic_step.1}
  #allocation0 [shape = 'u32[]', space=smem, size = 0x4, offset = 0x4, fixed_abs, tag = 'smem constant byte address 0x4 - core index']
  #allocation1 [shape = 'u32[144,128]{1,0:T(1,128)}', space=vmem, size = 0x12000, scoped, tag = 'internal scratch']
  %s0 = inlined_call_operand.vmem [shape: f32[8,16], index: 0, kind: input, shape index: {}]
  %s1 = inlined_call_operand.vmem [shape: f32[1,16], index: 1, kind: input, shape index: {}, may-alias: {1,3}]
  %s2 = inlined_call_operand.vmem [shape: f32[8,1], index: 2, kind: input, shape index: {}]
  %s3 = inlined_call_operand.vmem [shape: f32[1,16], index: 3, kind: output, shape index: {0}, may-alias: {1,3}]
  %s4 = inlined_call_operand.hbm [shape: f32[1,16], index: 4, kind: output, shape index: {1}]
  %5 = xla_tuple %s3, %s4
  %s6 = sld [smem:[#allocation0]]
  $region30: #{critic_step.1} parent=0
    _
  %s8 = ssub.s32 1, %s6
  %s9 = scalar_select 0, %s8, %s6
  $region1: #{critic_step.1} parent=0
    #allocation2 [shape = 'u8[512]{0}', space=vmem, size = 0x400, scoped, tag = 'output window, operand 1, single buffered']
    #allocation3 [shape = 's32[1]{0}', space=sflag, size = 0x4, scoped, tag = 'scoped memory for critic_step.1']
    %10 = vsyncpa [#allocation3], 0
    // Predicated region
    $region2: #{critic_step.1} parent=1 // pred_check
      _
    $region3: #{critic_step.1} parent=1 // pred_check_branch
      %12 = sbr.rel (0) target = $region5
    $region4: #{critic_step.1} parent=1 // pred_region
      _
    $region5: #{critic_step.1} parent=1 // pred_fallthru
      _
    // Predicated region
    $region6: #{critic_step.1} parent=1 // pred_check
      _
    $region7: #{critic_step.1} parent=1 // pred_check_branch
      %14 = sbr.rel (0) target = $region9
    $region8: #{critic_step.1} parent=1 // pred_region
      _
    $region9: #{critic_step.1} parent=1 // pred_fallthru
      _
    // Predicated region
    $region10: #{critic_step.1} parent=1 // pred_check
      _
    $region11: #{critic_step.1} parent=1 // pred_check_branch
      %16 = sbr.rel (0) target = $region13
    $region12: #{critic_step.1} parent=1 // pred_region
      _
    $region13: #{critic_step.1} parent=1 // pred_fallthru
      _
    %v17 = vld [vmem:[%s0] sm:$0xff]
    %v18 = vmul.f32 %v17, %v17
    %vm19 = vcmask 130048
    %v20 = vsel %vm19, %v18, 0.0
    %21 = vadd.xlane.f32.xlu0 %v20
    %v22 = vpop.xlane.xlu0 %21
    %v23 = vadd.f32 %v22, 1.0
    %v24 = vmul.f32 %v23, %v23
    %v25 = vrcp.pop %v24
    %v26 = vmul.f32 -0.5, %v25
    %v27 = vmul.f32 %v26, %v17
    %v28 = vld [vmem:[%s2] sm:$0xff]
    %v29 = vmul.f32 %v26, %v28
    %31 = vset.pattern.permute.xlu0 0
    %32 = vperm.xlu0 %31, %v29
    %v33 = vpop.permute.xlu0 %32
    %v35 = vmul.f32 %v33, %v17
    %v36 = vsel %vm19, %v35, 0.0
    %v37 = vrot.slane %v36, 4
    %v38 = vadd.f32 %v36, %v37
    %v39 = vrot.slane %v38, 2
    %v40 = vadd.f32 %v38, %v39
    %v41 = vrot.slane %v40, 1
    %v42 = vadd.f32 %v40, %v41
    %v43 = vld [vmem:[%s1] sm:$0x1]
    %v45 = vlaneseq
    %v46 = vshrl.u32 %v45, 7
    %v47 = vsub.s32 0, %v46
    %v48 = vrot.slane %v43, %v47
    %v50 = vmul.f32 %v17, %v48
    %v51 = vsel %vm19, %v50, 0.0
    %52 = vadd.xlane.f32.xlu0 %v51
    %v53 = vpop.xlane.xlu0 %52
    %v54 = vmul.f32 %v53, %v27
    %v55 = vsel %vm19, %v54, 0.0
    %v56 = vrot.slane %v55, 4
    %v57 = vadd.f32 %v55, %v56
    %v58 = vrot.slane %v57, 2
    %v59 = vadd.f32 %v57, %v58
    %v60 = vrot.slane %v59, 1
    %v61 = vadd.f32 %v59, %v60
    %v62 = vadd.f32 %v61, %v42
    %vm63 = vcmask 122880
    %64 = vst.msk [vmem:[#allocation2] sm:$0x1] %vm63, %v62
    %v65 = vmul.f32 %v62, 0.01
    %v66 = vadd.f32 %v43, %v65
    %67 = vst.msk [vmem:[%s3] sm:$0x1] %vm63, %v66
    // Predicated region
    $region14: #{critic_step.1} parent=1 // pred_check
      _
    $region15: #{critic_step.1} parent=1 // pred_check_branch
      %69 = sbr.rel (0) target = $region17
    $region16: #{critic_step.1} parent=1 // pred_region
      _
    $region17: #{critic_step.1} parent=1 // pred_fallthru
      _
    // Predicated region
    $region18: #{critic_step.1} parent=1 // pred_check
      _
    $region19: #{critic_step.1} parent=1 // pred_check_branch
      %71 = sbr.rel (0) target = $region21
    $region20: #{critic_step.1} parent=1 // pred_region
      %s73 = ssub.s32 16, 16
      %74 = vsyncadd [#allocation3], %s73
      %s76 = sshll.u32 [#allocation2], 4
      %s77 = int_to_ptr.vmem [resolvable:$true] %s76
      %79 = dma.vmem_to_hbm [thread:$0]  %s77, 16, %s4, [#allocation3]
    $region21: #{critic_step.1} parent=1 // pred_fallthru
      _
    // Predicated region
    $region22: #{critic_step.1} parent=1 // pred_check
      _
    $region23: #{critic_step.1} parent=1 // pred_check_branch
      %81 = sbr.rel (0) target = $region25
    $region24: #{critic_step.1} parent=1 // pred_region
      _
    $region25: #{critic_step.1} parent=1 // pred_fallthru
      _
    // Predicated region
    $region26: #{critic_step.1} parent=1 // pred_check
      _
    $region27: #{critic_step.1} parent=1 // pred_check_branch
      %83 = sbr.rel (0) target = $region29
    $region28: #{critic_step.1} parent=1 // pred_region
      %84 = dma.done [#allocation3], 16
    $region29: #{critic_step.1} parent=1 // pred_fallthru
      _
    %85 = vsyncpa [#allocation3], 1

</llo_original>
